<compile_context>
chip_gen: v5e
topology: v5e:2x2
jax: 0.10.0
libtpu: 0.0.40
codegen_flags: <defaults>
</compile_context>

<pallas_src>
import functools

import jax
import jax.numpy as jnp
from jax.experimental import pallas as pl
from jax.experimental.pallas import tpu as pltpu


def _round_up(x, m):
    return (x + m - 1) // m * m


def _mlp_fused_kernel(*refs, n_layers, matmul_dtype):
    """Fused MLP body.

    refs = (x_ref, w0_ref, b0_ref, w1_ref, b1_ref, ..., o_ref)
      x_ref : (tm, K)      row tile of the input
      wi_ref: (Ki, Ni)     full weight of layer i (in, out), resident in VMEM
      bi_ref: (1, Ni)      bias row of layer i
      o_ref : (tm, N_out)  row tile of the final output
    """
    x_ref = refs[0]
    o_ref = refs[-1]

    h = x_ref[...].astype(jnp.float32)
    for i in range(n_layers):
        w = refs[1 + 2 * i][...]
        b = refs[2 + 2 * i][...]
        if matmul_dtype is not None:
            lhs = h.astype(matmul_dtype)
            rhs = w.astype(matmul_dtype)
        else:
            lhs = h
            rhs = w.astype(jnp.float32)
        # MXU matmul with f32 accumulation.
        h = jnp.dot(lhs, rhs, preferred_element_type=jnp.float32)
        # Epilogue (bias + ReLU) kept in f32 on the VPU (cheap on all chips).
        h = h + b.astype(jnp.float32)
        if i < n_layers - 1:
            h = jnp.maximum(h, 0.0)
    o_ref[...] = h.astype(o_ref.dtype)


def mlp_forward_2d(x2d, params, *, tm=512, matmul_dtype=None):
    """Whole-MLP forward on a flattened (M, K) activation block, one pallas_call."""
    M, K = x2d.shape
    n_layers = len(params)
    n_out = params[-1][0].shape[1]

    # Pick the row tile: a single block when M is small, otherwise a large tile.
    m8 = _round_up(max(M, 1), 8)
    if m8 <= tm:
        tm_eff, m_pad = m8, m8
    else:
        tm_eff = tm
        m_pad = _round_up(M, tm_eff)

    # Zero-pad extra rows instead of asserting divisibility; padded rows just
    # produce bias-only garbage that is sliced off below.
    xp = x2d if m_pad == M else jnp.pad(x2d, ((0, m_pad - M), (0, 0)))

    in_specs = [pl.BlockSpec((tm_eff, K), lambda i: (i, 0))]
    flat_params = []
    for (w, b) in params:
        k_in, n_i = w.shape
        # Full-array blocks with constant index maps -> fetched once, stay in VMEM.
        in_specs.append(pl.BlockSpec((k_in, n_i), lambda i: (0, 0)))
        in_specs.append(pl.BlockSpec((1, n_i), lambda i: (0, 0)))
        flat_params.append(w)
        flat_params.append(b)

    kernel = functools.partial(
        _mlp_fused_kernel, n_layers=n_layers, matmul_dtype=matmul_dtype
    )

    out = pl.pallas_call(
        kernel,
        out_shape=jax.ShapeDtypeStruct((m_pad, n_out), x2d.dtype),
        grid_spec=pl.GridSpec(
            grid=(m_pad // tm_eff,),
            in_specs=in_specs,
            out_specs=pl.BlockSpec((tm_eff, n_out), lambda i: (i, 0)),
        ),
        compiler_params=pltpu.CompilerParams(
            # Row tiles are independent -> shard across TensorCores on v7x.
            dimension_semantics=("parallel",),
        ),
    )(xp, *flat_params)

    if m_pad != M:
        out = out[:M]
    return out


def _forward(X, params, *, tm, matmul_dtype):
    lead = X.shape[:-1]
    h = X.reshape(-1, X.shape[-1])
    out = mlp_forward_2d(h, params, tm=tm, matmul_dtype=matmul_dtype)
    return out.reshape(*lead, out.shape[-1])


class LocCompressor:
    """JAX/Pallas port of the PyTorch LocCompressor (a plain MLP).

    For i in range(len(dim_list) - 1):
        Linear(dim_list[i], dim_list[i+1])
        ReLU()   (only between layers, not after the last Linear)
    """

    def __init__(self, dim_list, key, dtype=jnp.float32, tm=512, matmul_dtype=None):
        self.dim_list = list(dim_list)
        self.dtype = dtype
        self.params = []  # list of (W, b): W is (in, out), b pre-reshaped to (1, out)
        for i in range(len(dim_list) - 1):
            fan_in, fan_out = dim_list[i], dim_list[i + 1]
            key, kw, kb = jax.random.split(key, 3)
            # Deterministic synthetic init (PyTorch-Linear-like uniform bound).
            bound = 1.0 / float(fan_in) ** 0.5
            w = jax.random.uniform(kw, (fan_in, fan_out), dtype, -bound, bound)
            b = jax.random.uniform(kb, (1, fan_out), dtype, -bound, bound)
            self.params.append((w, b))
        # Single jit over the whole forward: all layers run as one fused kernel.
        self._jitted = jax.jit(
            functools.partial(_forward, tm=tm, matmul_dtype=matmul_dtype)
        )

    def __call__(self, X):
        return self._jitted(X, self.params)


def reference_forward(params, X):
    """Pure-JAX reference (matches the PyTorch forward semantics)."""
    lead = X.shape[:-1]
    h = X.reshape(-1, X.shape[-1])
    for i, (w, b) in enumerate(params):
        h = h @ w + b  # b is (1, N), broadcasts over rows
        if i < len(params) - 1:
            h = jnp.maximum(h, 0.0)
    return h.reshape(*lead, params[-1][0].shape[1])


if __name__ == "__main__":
    key = jax.random.PRNGKey(0)
    k_in, k_in2, k_model = jax.random.split(key, 3)

    # Small shapes: compress 32 -> 64 -> 16.
    dim_list = [32, 64, 16]
    model = LocCompressor(dim_list, k_model)

    # Case 1: batch=2, seq=8  (M = 16 rows, single block).
    X = jax.random.normal(k_in, (2, 8, dim_list[0]), dtype=jnp.float32)
    out = jax.block_until_ready(model(X))
    ref = reference_forward(model.params, X)
    assert out.shape == (2, 8, dim_list[-1]), out.shape
    assert jnp.allclose(out, ref, atol=1e-5, rtol=1e-5), "mismatch vs reference"

    # Case 2: ragged row count (3*5 = 15 rows) exercises the zero-padding path.
    X2 = jax.random.normal(k_in2, (3, 5, dim_list[0]), dtype=jnp.float32)
    out2 = jax.block_until_ready(model(X2))
    ref2 = reference_forward(model.params, X2)
    assert out2.shape == (3, 5, dim_list[-1]), out2.shape
    assert jnp.allclose(out2, ref2, atol=1e-5, rtol=1e-5), "mismatch vs reference (ragged)"

    print("KERNEL_OK")
</pallas_src>

<mosaic_0001>
module attributes {stable_mosaic.version = 11 : i64} {
  func.func @_mlp_fused_kernel(%arg0: i32, %arg1: memref<16x32xf32, #tpu.memory_space<vmem>>, %arg2: memref<32x64xf32, #tpu.memory_space<vmem>>, %arg3: memref<1x64xf32, #tpu.memory_space<vmem>>, %arg4: memref<64x16xf32, #tpu.memory_space<vmem>>, %arg5: memref<1x16xf32, #tpu.memory_space<vmem>>, %arg6: memref<16x16xf32, #tpu.memory_space<vmem>>) attributes {dimension_semantics = [#tpu.dimension_semantics<parallel>], iteration_bounds = array<i64: 1>, scalar_prefetch = 0 : i64, scratch_operands = 0 : i64, tpu.core_type = #tpu.core_type<tc>, window_params = [{transform_indices = @transform_0, window_bounds = array<i64: 16, 32>}, {pipeline_mode = #tpu.pipeline_mode<synchronous>, transform_indices = @transform_1, window_bounds = array<i64: 32, 64>}, {pipeline_mode = #tpu.pipeline_mode<synchronous>, transform_indices = @transform_2, window_bounds = array<i64: 1, 64>}, {pipeline_mode = #tpu.pipeline_mode<synchronous>, transform_indices = @transform_3, window_bounds = array<i64: 64, 16>}, {pipeline_mode = #tpu.pipeline_mode<synchronous>, transform_indices = @transform_4, window_bounds = array<i64: 1, 16>}, {transform_indices = @transform_5, window_bounds = array<i64: 16, 16>}]} {
    %c0 = arith.constant 0 : index
    %c0_0 = arith.constant 0 : index
    %0 = vector.load %arg1[%c0, %c0_0] : memref<16x32xf32, #tpu.memory_space<vmem>>, vector<16x32xf32>
    %c0_1 = arith.constant 0 : index
    %c0_2 = arith.constant 0 : index
    %1 = vector.load %arg2[%c0_1, %c0_2] : memref<32x64xf32, #tpu.memory_space<vmem>>, vector<32x64xf32>
    %c0_3 = arith.constant 0 : index
    %c0_4 = arith.constant 0 : index
    %2 = vector.load %arg3[%c0_3, %c0_4] : memref<1x64xf32, #tpu.memory_space<vmem>>, vector<1x64xf32>
    %cst = arith.constant dense<0.000000e+00> : vector<16x64xf32>
    %3 = tpu.matmul %0, %1, %cst {dimension_numbers = #tpu.dot_dimension_numbers<[1], [0], [0], [1], [0, 0, 1, 1], [], []>} : vector<16x32xf32>, vector<32x64xf32>, vector<16x64xf32> -> vector<16x64xf32>
    %4 = vector.broadcast %2 : vector<1x64xf32> to vector<16x64xf32>
    %5 = arith.addf %3, %4 : vector<16x64xf32>
    %cst_5 = arith.constant 0.000000e+00 : f32
    %6 = vector.broadcast %cst_5 : f32 to vector<16x64xf32>
    %7 = arith.maximumf %5, %6 : vector<16x64xf32>
    %c0_6 = arith.constant 0 : index
    %c0_7 = arith.constant 0 : index
    %8 = vector.load %arg4[%c0_6, %c0_7] : memref<64x16xf32, #tpu.memory_space<vmem>>, vector<64x16xf32>
    %c0_8 = arith.constant 0 : index
    %c0_9 = arith.constant 0 : index
    %9 = vector.load %arg5[%c0_8, %c0_9] : memref<1x16xf32, #tpu.memory_space<vmem>>, vector<1x16xf32>
    %cst_10 = arith.constant dense<0.000000e+00> : vector<16x16xf32>
    %10 = tpu.matmul %7, %8, %cst_10 {dimension_numbers = #tpu.dot_dimension_numbers<[1], [0], [0], [1], [0, 0, 1, 1], [], []>} : vector<16x64xf32>, vector<64x16xf32>, vector<16x16xf32> -> vector<16x16xf32>
    %11 = vector.broadcast %9 : vector<1x16xf32> to vector<16x16xf32>
    %12 = arith.addf %10, %11 : vector<16x16xf32>
    %c0_11 = arith.constant 0 : index
    %c0_12 = arith.constant 0 : index
    %13 = vector.load %arg6[%c0_11, %c0_12] : memref<16x16xf32, #tpu.memory_space<vmem>>, vector<16x16xf32>
    tpu.vector_store %arg6[%c0_11, %c0_12], %12 {strides = array<i32>} : memref<16x16xf32, #tpu.memory_space<vmem>>, vector<16x16xf32>,
    return
  }
  func.func @transform_0(%arg0: i32) -> (i32, i32) {
    %c0_i32 = arith.constant 0 : i32
    %c0_i32_0 = arith.constant 0 : i32
    return %arg0, %c0_i32 : i32, i32
  }
  func.func @transform_1(%arg0: i32) -> (i32, i32) {
    %c0_i32 = arith.constant 0 : i32
    %c0_i32_0 = arith.constant 0 : i32
    %c0_i32_1 = arith.constant 0 : i32
    return %c0_i32, %c0_i32_0 : i32, i32
  }
  func.func @transform_2(%arg0: i32) -> (i32, i32) {
    %c0_i32 = arith.constant 0 : i32
    %c0_i32_0 = arith.constant 0 : i32
    %c0_i32_1 = arith.constant 0 : i32
    return %c0_i32, %c0_i32_0 : i32, i32
  }
  func.func @transform_3(%arg0: i32) -> (i32, i32) {
    %c0_i32 = arith.constant 0 : i32
    %c0_i32_0 = arith.constant 0 : i32
    %c0_i32_1 = arith.constant 0 : i32
    return %c0_i32, %c0_i32_0 : i32, i32
  }
  func.func @transform_4(%arg0: i32) -> (i32, i32) {
    %c0_i32 = arith.constant 0 : i32
    %c0_i32_0 = arith.constant 0 : i32
    %c0_i32_1 = arith.constant 0 : i32
    return %c0_i32, %c0_i32_0 : i32, i32
  }
  func.func @transform_5(%arg0: i32) -> (i32, i32) {
    %c0_i32 = arith.constant 0 : i32
    %c0_i32_0 = arith.constant 0 : i32
    return %arg0, %c0_i32 : i32, i32
  }
}

</mosaic_0001>

<llo_original>
// kernel: _forward.1
$region0: #{_forward.1}
  #allocation0 [shape = 'u32[]', space=smem, size = 0x4, offset = 0x4, fixed_abs, tag = 'smem constant byte address 0x4 - core index']
  #allocation1 [shape = 'u32[72,128]{1,0:T(1,128)}', space=vmem, size = 0x9000, scoped, tag = 'internal scratch']
  %s0 = inlined_call_operand.vmem [shape: f32[16,32], index: 0, kind: input, shape index: {}]
  %s1 = inlined_call_operand.vmem [shape: f32[32,64], index: 1, kind: input, shape index: {}]
  %s2 = inlined_call_operand.vmem [shape: f32[1,64], index: 2, kind: input, shape index: {}]
  %s3 = inlined_call_operand.vmem [shape: f32[64,16], index: 3, kind: input, shape index: {}]
  %s4 = inlined_call_operand.vmem [shape: f32[1,16], index: 4, kind: input, shape index: {}]
  %s5 = inlined_call_operand.hbm [shape: f32[16,16], index: 5, kind: output, shape index: {}]
  %s6 = sld [smem:[#allocation0]]
  $region30: #{_forward.1} parent=0
    _
  %s8 = ssub.s32 1, %s6
  %s9 = scalar_select 0, %s8, %s6
  $region1: #{_forward.1} parent=0
    #allocation2 [shape = 'u8[8192]{0}', space=vmem, size = 0x2000, scoped, tag = 'output window, operand 0, single buffered']
    #allocation3 [shape = 's32[1]{0}', space=sflag, size = 0x4, scoped, tag = 'scoped memory for _forward.1']
    %10 = vsyncpa [#allocation3], 0
    // Predicated region
    $region2: #{_forward.1} parent=1 // pred_check
      _
    $region3: #{_forward.1} parent=1 // pred_check_branch
      %12 = sbr.rel (0) target = $region5
    $region4: #{_forward.1} parent=1 // pred_region
      _
    $region5: #{_forward.1} parent=1 // pred_fallthru
      _
    // Predicated region
    $region6: #{_forward.1} parent=1 // pred_check
      _
    $region7: #{_forward.1} parent=1 // pred_check_branch
      %14 = sbr.rel (0) target = $region9
    $region8: #{_forward.1} parent=1 // pred_region
      _
    $region9: #{_forward.1} parent=1 // pred_fallthru
      _
    // Predicated region
    $region10: #{_forward.1} parent=1 // pred_check
      _
    $region11: #{_forward.1} parent=1 // pred_check_branch
      %16 = sbr.rel (0) target = $region13
    $region12: #{_forward.1} parent=1 // pred_region
      _
    $region13: #{_forward.1} parent=1 // pred_fallthru
      _
    // Predicated region
    $region14: #{_forward.1} parent=1 // pred_check
      _
    $region15: #{_forward.1} parent=1 // pred_check_branch
      %18 = sbr.rel (0) target = $region17
    $region16: #{_forward.1} parent=1 // pred_region
      _
    $region17: #{_forward.1} parent=1 // pred_fallthru
      _
    // Predicated region
    $region18: #{_forward.1} parent=1 // pred_check
      _
    $region19: #{_forward.1} parent=1 // pred_check_branch
      %20 = sbr.rel (0) target = $region21
    $region20: #{_forward.1} parent=1 // pred_region
      _
    $region21: #{_forward.1} parent=1 // pred_fallthru
      _
    %v21 = vld [vmem:[%s0] sm:$0xff]
    %v22 = vld [vmem:[%s0 + $0x8] sm:$0xff]
    %v23 = vld [vmem:[%s1] sm:$0xff]
    %v24 = vld [vmem:[%s1 + $0x8] sm:$0xff]
    %v25 = vld [vmem:[%s1 + $0x10] sm:$0xff]
    %v26 = vld [vmem:[%s1 + $0x18] sm:$0xff]
    %v27 = vld [vmem:[%s2] sm:$0x1]
    %v29 = vperm.slane %v27, 0
    %vm31 = vcmask 261120
    %v33 = vsel %vm31, %v21, 0
    %v36 = vsel %vm31, %v22, 0
    %38 = vmatpush.msra.mxu0 0.0
    %39 = vmatpush.msra.mxu0 0.0
    %40 = vmatpush.msra.mxu0 0.0
    %41 = vmatpush.msra.mxu0 0.0
    %42 = vmatpush.msra.mxu0 0.0
    %43 = vmatpush.msra.mxu0 0.0
    %44 = vmatpush.msra.mxu0 0.0
    %45 = vmatpush.msra.mxu0 0.0
    %46 = vmatpush.msra.mxu0 0.0
    %47 = vmatpush.msra.mxu0 0.0
    %48 = vmatpush.msra.mxu0 0.0
    %49 = vmatpush.msra.mxu0 0.0
    %50 = vmatpush.msra.mxu0 %v26
    %51 = vmatpush.msra.mxu0 %v25
    %52 = vmatpush.msra.mxu0 %v24
    %53 = vmatpush.msra.mxu0 %v23
    %54 = vmatmul.f32.gmra.mxu0 %v33
    %v55 = vpop.f32.mrf.mxu0
    %v56 = vadd.f32 %v29, %v55
    %57 = vmatmul.f32.gmra.mxu0 %v36
    %v58 = vpop.f32.mrf.mxu0
    %v59 = vadd.f32 %v29, %v58
    %60 = vdwg.mxu0
    %v61 = vmax.f32 %v56, 0.0
    %v62 = vmax.f32 %v59, 0.0
    %v63 = vld [vmem:[%s3] sm:$0xff]
    %v64 = vld [vmem:[%s3 + $0x8] sm:$0xff]
    %v65 = vld [vmem:[%s3 + $0x10] sm:$0xff]
    %v66 = vld [vmem:[%s3 + $0x18] sm:$0xff]
    %v67 = vld [vmem:[%s3 + $0x20] sm:$0xff]
    %v68 = vld [vmem:[%s3 + $0x28] sm:$0xff]
    %v69 = vld [vmem:[%s3 + $0x30] sm:$0xff]
    %v70 = vld [vmem:[%s3 + $0x38] sm:$0xff]
    %v71 = vld [vmem:[%s4] sm:$0x1]
    %v73 = vperm.slane %v71, 0
    %vm75 = vcmask 523264
    %v77 = vsel %vm75, %v61, 0
    %v80 = vsel %vm75, %v62, 0
    %82 = vmatpush.msra.mxu0 0.0
    %83 = vmatpush.msra.mxu0 0.0
    %84 = vmatpush.msra.mxu0 0.0
    %85 = vmatpush.msra.mxu0 0.0
    %86 = vmatpush.msra.mxu0 0.0
    %87 = vmatpush.msra.mxu0 0.0
    %88 = vmatpush.msra.mxu0 0.0
    %89 = vmatpush.msra.mxu0 0.0
    %90 = vmatpush.msra.mxu0 %v70
    %91 = vmatpush.msra.mxu0 %v69
    %92 = vmatpush.msra.mxu0 %v68
    %93 = vmatpush.msra.mxu0 %v67
    %94 = vmatpush.msra.mxu0 %v66
    %95 = vmatpush.msra.mxu0 %v65
    %96 = vmatpush.msra.mxu0 %v64
    %97 = vmatpush.msra.mxu0 %v63
    %98 = vmatmul.f32.gmra.mxu0 %v77
    %v99 = vpop.f32.mrf.mxu0
    %v100 = vadd.f32 %v73, %v99
    %101 = vmatmul.f32.gmra.mxu0 %v80
    %v102 = vpop.f32.mrf.mxu0
    %v103 = vadd.f32 %v73, %v102
    %104 = vdwg.mxu0
    %vm105 = vcmask 130048
    %106 = vst.msk [vmem:[#allocation2] sm:$0xff] %vm105, %v100
    %107 = vst.msk [vmem:[#allocation2 + $0x8] sm:$0xff] %vm105, %v103
    // Predicated region
    $region22: #{_forward.1} parent=1 // pred_check
      _
    $region23: #{_forward.1} parent=1 // pred_check_branch
      %109 = sbr.rel (0) target = $region25
    $region24: #{_forward.1} parent=1 // pred_region
      %111 = vsyncadd [#allocation3], 0
      %s112 = sshll.u32 [#allocation2], 4
      %s113 = int_to_ptr.vmem [resolvable:$true] %s112
      %s114 = sshll.u32 %s5, 4
      %s115 = int_to_ptr.hbm [resolvable:$true] %s114
      %120 = dma.vmem_to_hbm [thread:$0]  %s113, 256, %s115, [#allocation3], 128, 128, 8
    $region25: #{_forward.1} parent=1 // pred_fallthru
      _
    // Predicated region
    $region26: #{_forward.1} parent=1 // pred_check
      _
    $region27: #{_forward.1} parent=1 // pred_check_branch
      %122 = sbr.rel (0) target = $region29
    $region28: #{_forward.1} parent=1 // pred_region
      %124 = dma.done [#allocation3], 256
    $region29: #{_forward.1} parent=1 // pred_fallthru
      _
    %125 = vsyncpa [#allocation3], 1

</llo_original>
